<compile_context>
chip_gen: v5e
topology: v5e:2x2
jax: 0.10.0
libtpu: 0.0.40
codegen_flags: <defaults>
</compile_context>

<pallas_src>
import jax
import jax.numpy as jnp
from jax import lax
from jax.experimental import pallas as pl
from jax.experimental.pallas import tpu as pltpu


def _nand_kernel(x_ref, wa_ref, wb_ref, na_ref, o_ref, acc_a, acc_b):
    k = pl.program_id(2)

    @pl.when(k == 0)
    def _init():
        acc_a[...] = jnp.zeros_like(acc_a)
        acc_b[...] = jnp.zeros_like(acc_b)

    x = x_ref[...]                                   # (tb, tk)
    # contract last dim of x with last dim of w (w is stored (Dy, Dx), i.e. x @ w.T)
    dn = (((1,), (1,)), ((), ()))
    acc_a[...] += lax.dot_general(x, wa_ref[...], dn,
                                  preferred_element_type=jnp.float32)
    acc_b[...] += lax.dot_general(x, wb_ref[...], dn,
                                  preferred_element_type=jnp.float32)

    @pl.when(k == pl.num_programs(2) - 1)
    def _finish():
        v = acc_a[...] * acc_b[...]                  # SparseBtnn_And output
        flip = na_ref[...] > 0.0                     # (1, ty) -> broadcasts over rows
        # qa + v - 2*qa*v with boolean qa == select(n_a > 0, 1 - v, v)
        o_ref[...] = jnp.where(flip, 1.0 - v, v).astype(o_ref.dtype)


def sparse_btnn_nand_apply(x, masked_a, masked_b, n_a, *, tb=128, ty=256, tk=512):
    """x: (B, Dx); masked_a/masked_b: (Dy, Dx); n_a: (Dy,) -> (B, Dy)."""
    B, Dx = x.shape
    Dy, Dx2 = masked_a.shape
    assert Dx == Dx2 and masked_b.shape == (Dy, Dx) and n_a.shape == (Dy,)

    tb = min(tb, B)
    ty = min(ty, Dy)
    tk = min(tk, Dx)
    assert B % tb == 0 and Dy % ty == 0 and Dx % tk == 0, "tiles must divide shapes"

    na2 = n_a.reshape(1, Dy)
    grid = (B // tb, Dy // ty, Dx // tk)

    return pl.pallas_call(
        _nand_kernel,
        out_shape=jax.ShapeDtypeStruct((B, Dy), x.dtype),
        grid_spec=pltpu.PrefetchScalarGridSpec(
            num_scalar_prefetch=0,
            grid=grid,
            in_specs=[
                pl.BlockSpec((tb, tk), lambda i, j, k: (i, k)),   # x
                pl.BlockSpec((ty, tk), lambda i, j, k: (j, k)),   # masked_a
                pl.BlockSpec((ty, tk), lambda i, j, k: (j, k)),   # masked_b
                pl.BlockSpec((1, ty), lambda i, j, k: (0, j)),    # n_a (resident)
            ],
            out_specs=pl.BlockSpec((tb, ty), lambda i, j, k: (i, j)),
            scratch_shapes=[pltpu.VMEM((tb, ty), jnp.float32),
                            pltpu.VMEM((tb, ty), jnp.float32)],
        ),
        compiler_params=pltpu.CompilerParams(
            dimension_semantics=("parallel", "parallel", "arbitrary")),
    )(x, masked_a, masked_b, na2)


def weighted_random_mask(key, selector, temperature=1.0):
    """Forward value of weighted_random(): one-hot mask sampled from softmax rows."""
    idx = jax.random.categorical(key, selector / temperature, axis=1)   # (Dy,)
    return jax.nn.one_hot(idx, selector.shape[1], dtype=selector.dtype)


def sparse_btnn_nand_forward(x, wa, wb, n_a, key, temperature=1.0):
    ka, kb = jax.random.split(key)
    masked_a = weighted_random_mask(ka, wa, temperature)
    masked_b = weighted_random_mask(kb, wb, temperature)
    out = sparse_btnn_nand_apply(x, masked_a, masked_b, n_a)
    return out, (masked_a, masked_b)


if __name__ == "__main__":
    B, Dx, Dy = 16, 512, 256
    key = jax.random.PRNGKey(0)
    kx, kwa, kwb, kna, ksample = jax.random.split(key, 5)

    x = jax.random.normal(kx, (B, Dx), dtype=jnp.float32)

    # xavier_uniform init for the two selector weights (shape: (out, in))
    limit = (6.0 / (Dx + Dy)) ** 0.5
    wa = jax.random.uniform(kwa, (Dy, Dx), minval=-limit, maxval=limit,
                            dtype=jnp.float32)
    wb = jax.random.uniform(kwb, (Dy, Dx), minval=-limit, maxval=limit,
                            dtype=jnp.float32)
    # SparseBtnn_Not(y): randn parameter of shape (Dy,)
    n_a = jax.random.normal(kna, (Dy,), dtype=jnp.float32)

    out, (masked_a, masked_b) = sparse_btnn_nand_forward(x, wa, wb, n_a, ksample)
    jax.block_until_ready(out)

    # plain-JAX reference using the SAME sampled masks
    va = x @ masked_a.T
    vb = x @ masked_b.T
    v = va * vb
    qa = (n_a > 0).astype(jnp.float32)[None, :]
    ref = qa + v - 2.0 * qa * v
    assert jnp.allclose(out, ref, atol=1e-5, rtol=1e-5), "mismatch vs reference"

    print("KERNEL_OK")
</pallas_src>

<mosaic_0001>
module attributes {stable_mosaic.version = 11 : i64} {
  func.func @_nand_kernel(%arg0: i32, %arg1: i32, %arg2: i32, %arg3: memref<16x512xf32, #tpu.memory_space<vmem>>, %arg4: memref<256x512xf32, #tpu.memory_space<vmem>>, %arg5: memref<256x512xf32, #tpu.memory_space<vmem>>, %arg6: memref<1x256xf32, #tpu.memory_space<vmem>>, %arg7: memref<16x256xf32, #tpu.memory_space<vmem>>, %arg8: memref<16x256xf32, #tpu.memory_space<vmem>>, %arg9: memref<16x256xf32, #tpu.memory_space<vmem>>) attributes {dimension_semantics = [#tpu.dimension_semantics<parallel>, #tpu.dimension_semantics<parallel>, #tpu.dimension_semantics<arbitrary>], iteration_bounds = array<i64: 1, 1, 1>, scalar_prefetch = 0 : i64, scratch_operands = 2 : i64, tpu.core_type = #tpu.core_type<tc>, window_params = [{transform_indices = @transform_0, window_bounds = array<i64: 16, 512>}, {transform_indices = @transform_1, window_bounds = array<i64: 256, 512>}, {transform_indices = @transform_2, window_bounds = array<i64: 256, 512>}, {transform_indices = @transform_3, window_bounds = array<i64: 1, 256>}, {transform_indices = @transform_4, window_bounds = array<i64: 16, 256>}]} {
    %c0_i32 = arith.constant 0 : i32
    %0 = arith.cmpi eq, %arg2, %c0_i32 : i32
    %1 = arith.extui %0 : i1 to i32
    %c0_i32_0 = arith.constant 0 : i32
    %2 = arith.cmpi ne, %1, %c0_i32_0 : i32
    scf.if %2 {
      %cst_17 = arith.constant 0.000000e+00 : f32
      %17 = vector.broadcast %cst_17 : f32 to vector<16x256xf32>
      %c0_18 = arith.constant 0 : index
      %c0_19 = arith.constant 0 : index
      %18 = vector.load %arg8[%c0_18, %c0_19] : memref<16x256xf32, #tpu.memory_space<vmem>>, vector<16x256xf32>
      tpu.vector_store %arg8[%c0_18, %c0_19], %17 {strides = array<i32>} : memref<16x256xf32, #tpu.memory_space<vmem>>, vector<16x256xf32>,
      %cst_20 = arith.constant 0.000000e+00 : f32
      %19 = vector.broadcast %cst_20 : f32 to vector<16x256xf32>
      %c0_21 = arith.constant 0 : index
      %c0_22 = arith.constant 0 : index
      %20 = vector.load %arg9[%c0_21, %c0_22] : memref<16x256xf32, #tpu.memory_space<vmem>>, vector<16x256xf32>
      tpu.vector_store %arg9[%c0_21, %c0_22], %19 {strides = array<i32>} : memref<16x256xf32, #tpu.memory_space<vmem>>, vector<16x256xf32>,
    } else {
    }
    %c0 = arith.constant 0 : index
    %c0_1 = arith.constant 0 : index
    %3 = vector.load %arg3[%c0, %c0_1] : memref<16x512xf32, #tpu.memory_space<vmem>>, vector<16x512xf32>
    %c0_2 = arith.constant 0 : index
    %c0_3 = arith.constant 0 : index
    %4 = vector.load %arg8[%c0_2, %c0_3] : memref<16x256xf32, #tpu.memory_space<vmem>>, vector<16x256xf32>
    %c0_4 = arith.constant 0 : index
    %c0_5 = arith.constant 0 : index
    %5 = vector.load %arg4[%c0_4, %c0_5] : memref<256x512xf32, #tpu.memory_space<vmem>>, vector<256x512xf32>
    %cst = arith.constant dense<0.000000e+00> : vector<16x256xf32>
    %6 = tpu.matmul %3, %5, %cst {dimension_numbers = #tpu.dot_dimension_numbers<[1], [1], [0], [0], [0, 0, 1, 0], [], []>} : vector<16x512xf32>, vector<256x512xf32>, vector<16x256xf32> -> vector<16x256xf32>
    %7 = arith.addf %4, %6 : vector<16x256xf32>
    %c0_6 = arith.constant 0 : index
    %c0_7 = arith.constant 0 : index
    %8 = vector.load %arg8[%c0_6, %c0_7] : memref<16x256xf32, #tpu.memory_space<vmem>>, vector<16x256xf32>
    tpu.vector_store %arg8[%c0_6, %c0_7], %7 {strides = array<i32>} : memref<16x256xf32, #tpu.memory_space<vmem>>, vector<16x256xf32>,
    %c0_8 = arith.constant 0 : index
    %c0_9 = arith.constant 0 : index
    %9 = vector.load %arg9[%c0_8, %c0_9] : memref<16x256xf32, #tpu.memory_space<vmem>>, vector<16x256xf32>
    %c0_10 = arith.constant 0 : index
    %c0_11 = arith.constant 0 : index
    %10 = vector.load %arg5[%c0_10, %c0_11] : memref<256x512xf32, #tpu.memory_space<vmem>>, vector<256x512xf32>
    %cst_12 = arith.constant dense<0.000000e+00> : vector<16x256xf32>
    %11 = tpu.matmul %3, %10, %cst_12 {dimension_numbers = #tpu.dot_dimension_numbers<[1], [1], [0], [0], [0, 0, 1, 0], [], []>} : vector<16x512xf32>, vector<256x512xf32>, vector<16x256xf32> -> vector<16x256xf32>
    %12 = arith.addf %9, %11 : vector<16x256xf32>
    %c0_13 = arith.constant 0 : index
    %c0_14 = arith.constant 0 : index
    %13 = vector.load %arg9[%c0_13, %c0_14] : memref<16x256xf32, #tpu.memory_space<vmem>>, vector<16x256xf32>
    tpu.vector_store %arg9[%c0_13, %c0_14], %12 {strides = array<i32>} : memref<16x256xf32, #tpu.memory_space<vmem>>, vector<16x256xf32>,
    %c0_i32_15 = arith.constant 0 : i32
    %14 = arith.cmpi eq, %arg2, %c0_i32_15 : i32
    %15 = arith.extui %14 : i1 to i32
    %c0_i32_16 = arith.constant 0 : i32
    %16 = arith.cmpi ne, %15, %c0_i32_16 : i32
    scf.if %16 {
      %c0_17 = arith.constant 0 : index
      %c0_18 = arith.constant 0 : index
      %17 = vector.load %arg8[%c0_17, %c0_18] : memref<16x256xf32, #tpu.memory_space<vmem>>, vector<16x256xf32>
      %c0_19 = arith.constant 0 : index
      %c0_20 = arith.constant 0 : index
      %18 = vector.load %arg9[%c0_19, %c0_20] : memref<16x256xf32, #tpu.memory_space<vmem>>, vector<16x256xf32>
      %19 = arith.mulf %17, %18 : vector<16x256xf32>
      %c0_21 = arith.constant 0 : index
      %c0_22 = arith.constant 0 : index
      %20 = vector.load %arg6[%c0_21, %c0_22] : memref<1x256xf32, #tpu.memory_space<vmem>>, vector<1x256xf32>
      %cst_23 = arith.constant 0.000000e+00 : f32
      %21 = vector.broadcast %cst_23 : f32 to vector<1x256xf32>
      %22 = arith.cmpf ogt, %20, %21 : vector<1x256xf32>
      %cst_24 = arith.constant 1.000000e+00 : f32
      %23 = vector.broadcast %cst_24 : f32 to vector<16x256xf32>
      %24 = arith.subf %23, %19 : vector<16x256xf32>
      %25 = vector.shape_cast %22 : vector<1x256xi1> to vector<1x256xi1>
      %26 = vector.broadcast %25 : vector<1x256xi1> to vector<16x256xi1>
      %27 = arith.select %26, %24, %19 : vector<16x256xi1>, vector<16x256xf32>
      %c0_25 = arith.constant 0 : index
      %c0_26 = arith.constant 0 : index
      %28 = vector.load %arg7[%c0_25, %c0_26] : memref<16x256xf32, #tpu.memory_space<vmem>>, vector<16x256xf32>
      tpu.vector_store %arg7[%c0_25, %c0_26], %27 {strides = array<i32>} : memref<16x256xf32, #tpu.memory_space<vmem>>, vector<16x256xf32>,
    } else {
    }
    return
  }
  func.func @transform_0(%arg0: i32, %arg1: i32, %arg2: i32) -> (i32, i32) {
    %c0_i32 = arith.constant 0 : i32
    return %arg0, %arg2 : i32, i32
  }
  func.func @transform_1(%arg0: i32, %arg1: i32, %arg2: i32) -> (i32, i32) {
    %c0_i32 = arith.constant 0 : i32
    return %arg1, %arg2 : i32, i32
  }
  func.func @transform_2(%arg0: i32, %arg1: i32, %arg2: i32) -> (i32, i32) {
    %c0_i32 = arith.constant 0 : i32
    return %arg1, %arg2 : i32, i32
  }
  func.func @transform_3(%arg0: i32, %arg1: i32, %arg2: i32) -> (i32, i32) {
    %c0_i32 = arith.constant 0 : i32
    %c0_i32_0 = arith.constant 0 : i32
    return %c0_i32, %arg1 : i32, i32
  }
  func.func @transform_4(%arg0: i32, %arg1: i32, %arg2: i32) -> (i32, i32) {
    %c0_i32 = arith.constant 0 : i32
    return %arg0, %arg1 : i32, i32
  }
}

</mosaic_0001>

<llo_original>
// kernel: tpu_custom_call.1
$region0: #{tpu_custom_call.1}
  #allocation0 [shape = 'u32[]', space=smem, size = 0x4, offset = 0x4, fixed_abs, tag = 'smem constant byte address 0x4 - core index']
  #allocation1 [shape = 'u32[72,128]{1,0:T(1,128)}', space=vmem, size = 0x9000, scoped, tag = 'internal scratch']
  #allocation2 [shape = 'f32[16,256]{1,0:T(8,128)}', space=vmem, size = 0x4000, scoped, tag = 'scratch operand']
  #allocation3 [shape = 'f32[16,256]{1,0:T(8,128)}', space=vmem, size = 0x4000, scoped, tag = 'scratch operand']
  %s0 = inlined_call_operand.hbm [shape: f32[16,512], index: 0, kind: input, shape index: {}]
  %s1 = inlined_call_operand.hbm [shape: f32[256,512], index: 1, kind: input, shape index: {}]
  %s2 = inlined_call_operand.hbm [shape: f32[256,512], index: 2, kind: input, shape index: {}]
  %s3 = inlined_call_operand.vmem [shape: f32[1,256], index: 3, kind: input, shape index: {}]
  %s4 = inlined_call_operand.hbm [shape: f32[16,256], index: 4, kind: output, shape index: {}]
  %s5 = sld [smem:[#allocation0]]
  $region46: #{tpu_custom_call.1} parent=0
    _
  %s7 = ssub.s32 1, %s5
  %s8 = scalar_select 0, %s7, %s5
  $region1: #{tpu_custom_call.1} parent=0
    #allocation4 [shape = 'u8[32768]{0}', space=vmem, size = 0x8000, scoped, tag = 'input window, operand 0, single buffered']
    #allocation5 [shape = 's32[1]{0}', space=sflag, size = 0x4, scoped, tag = 'scoped memory for tpu_custom_call.1']
    #allocation6 [shape = 's32[1]{0}', space=sflag, size = 0x4, scoped, tag = 'scoped memory for tpu_custom_call.1']
    #allocation7 [shape = 'u8[524288]{0}', space=vmem, size = 0x80000, scoped, tag = 'input window, operand 1, single buffered']
    #allocation8 [shape = 's32[1]{0}', space=sflag, size = 0x4, scoped, tag = 'scoped memory for tpu_custom_call.1']
    #allocation9 [shape = 'u8[524288]{0}', space=vmem, size = 0x80000, scoped, tag = 'input window, operand 2, single buffered']
    #allocation10 [shape = 'u8[16384]{0}', space=vmem, size = 0x4000, scoped, tag = 'output window, operand 0, single buffered']
    %9 = vsyncpa [#allocation5], 0
    %10 = vsyncpa [#allocation8], 0
    %11 = vsyncpa [#allocation6], 0
    // Predicated region
    $region2: #{tpu_custom_call.1} parent=1 // pred_check
      _
    $region3: #{tpu_custom_call.1} parent=1 // pred_check_branch
      %13 = sbr.rel (0) target = $region5
    $region4: #{tpu_custom_call.1} parent=1 // pred_region
      %15 = vsyncadd [#allocation5], 0
      %s16 = sshll.u32 %s0, 4
      %s17 = int_to_ptr.hbm [resolvable:$true] %s16
      %s18 = sshll.u32 [#allocation4], 4
      %s19 = int_to_ptr.vmem [resolvable:$true] %s18
      %24 = dma.hbm_to_vmem [thread:$0]  %s17, 1024, %s19, [#allocation5], 512, 512, 32
    $region5: #{tpu_custom_call.1} parent=1 // pred_fallthru
      _
    // Predicated region
    $region6: #{tpu_custom_call.1} parent=1 // pred_check
      _
    $region7: #{tpu_custom_call.1} parent=1 // pred_check_branch
      %26 = sbr.rel (0) target = $region9
    $region8: #{tpu_custom_call.1} parent=1 // pred_region
      %28 = vsyncadd [#allocation8], 0
      %s29 = sshll.u32 %s1, 4
      %s30 = int_to_ptr.hbm [resolvable:$true] %s29
      %s31 = sshll.u32 [#allocation7], 4
      %s32 = int_to_ptr.vmem [resolvable:$true] %s31
      %37 = dma.hbm_to_vmem [thread:$0]  %s30, 16384, %s32, [#allocation8], 512, 512, 32
    $region9: #{tpu_custom_call.1} parent=1 // pred_fallthru
      _
    // Predicated region
    $region10: #{tpu_custom_call.1} parent=1 // pred_check
      _
    $region11: #{tpu_custom_call.1} parent=1 // pred_check_branch
      %39 = sbr.rel (0) target = $region13
    $region12: #{tpu_custom_call.1} parent=1 // pred_region
      %41 = vsyncadd [#allocation8], 0
      %s42 = sshll.u32 %s2, 4
      %s43 = int_to_ptr.hbm [resolvable:$true] %s42
      %s44 = sshll.u32 [#allocation9], 4
      %s45 = int_to_ptr.vmem [resolvable:$true] %s44
      %50 = dma.hbm_to_vmem [thread:$0]  %s43, 16384, %s45, [#allocation8], 512, 512, 32
    $region13: #{tpu_custom_call.1} parent=1 // pred_fallthru
      _
    // Predicated region
    $region14: #{tpu_custom_call.1} parent=1 // pred_check
      _
    $region15: #{tpu_custom_call.1} parent=1 // pred_check_branch
      %52 = sbr.rel (0) target = $region17
    $region16: #{tpu_custom_call.1} parent=1 // pred_region
      _
    $region17: #{tpu_custom_call.1} parent=1 // pred_fallthru
      _
    // Predicated region
    $region18: #{tpu_custom_call.1} parent=1 // pred_check
      _
    $region19: #{tpu_custom_call.1} parent=1 // pred_check_branch
      %54 = sbr.rel (0) target = $region21
    $region20: #{tpu_custom_call.1} parent=1 // pred_region
      %56 = dma.done [#allocation5], 1024
    $region21: #{tpu_custom_call.1} parent=1 // pred_fallthru
      _
    // Predicated region
    $region22: #{tpu_custom_call.1} parent=1 // pred_check
      _
    $region23: #{tpu_custom_call.1} parent=1 // pred_check_branch
      %58 = sbr.rel (0) target = $region25
    $region24: #{tpu_custom_call.1} parent=1 // pred_region
      %60 = dma.done [#allocation8], 16384
    $region25: #{tpu_custom_call.1} parent=1 // pred_fallthru
      _
    // Predicated region
    $region26: #{tpu_custom_call.1} parent=1 // pred_check
      _
    $region27: #{tpu_custom_call.1} parent=1 // pred_check_branch
      %62 = sbr.rel (0) target = $region29
    $region28: #{tpu_custom_call.1} parent=1 // pred_region
      %64 = dma.done [#allocation8], 16384
    $region29: #{tpu_custom_call.1} parent=1 // pred_fallthru
      _
    %p65 = scmp.eq.s32.totalorder 0, 0
    // Predicated region
    $region30: #{tpu_custom_call.1} parent=1 // pred_check
      %p66 = pneg %p65
    $region31: #{tpu_custom_call.1} parent=1 // pred_check_branch
      %68 = sbr.rel (%p66) target = $region33
    $region32: #{tpu_custom_call.1} parent=1 // pred_region
      %69 = vst [vmem:[#allocation2] sm:$0xff] 0.0
      %70 = vst [vmem:[#allocation2 + $0x8] sm:$0xff] 0.0
      %71 = vst [vmem:[#allocation2 + $0x10] sm:$0xff] 0.0
      %72 = vst [vmem:[#allocation2 + $0x18] sm:$0xff] 0.0
      %73 = vst [vmem:[#allocation3] sm:$0xff] 0.0
      %74 = vst [vmem:[#allocation3 + $0x8] sm:$0xff] 0.0
      %75 = vst [vmem:[#allocation3 + $0x10] sm:$0xff] 0.0
      %76 = vst [vmem:[#allocation3 + $0x18] sm:$0xff] 0.0
    $region33: #{tpu_custom_call.1} parent=1 // pred_fallthru
      _
    %v77 = vld [vmem:[#allocation4] sm:$0xff]
    %v78 = vld [vmem:[#allocation4 + $0x8] sm:$0xff]
    %v79 = vld [vmem:[#allocation4 + $0x10] sm:$0xff]
    %v80 = vld [vmem:[#allocation4 + $0x18] sm:$0xff]
    %v81 = vld [vmem:[#allocation4 + $0x20] sm:$0xff]
    %v82 = vld [vmem:[#allocation4 + $0x28] sm:$0xff]
    %v83 = vld [vmem:[#allocation4 + $0x30] sm:$0xff]
    %v84 = vld [vmem:[#allocation4 + $0x38] sm:$0xff]
    %v85 = vld [vmem:[#allocation2] sm:$0xff]
    %v86 = vld [vmem:[#allocation2 + $0x8] sm:$0xff]
    %v87 = vld [vmem:[#allocation2 + $0x10] sm:$0xff]
    %v88 = vld [vmem:[#allocation2 + $0x18] sm:$0xff]
    %v89 = vld [vmem:[#allocation7] sm:$0xff]
    %v90 = vld [vmem:[#allocation7 + $0x8] sm:$0xff]
    %v91 = vld [vmem:[#allocation7 + $0x10] sm:$0xff]
    %v92 = vld [vmem:[#allocation7 + $0x18] sm:$0xff]
    %v93 = vld [vmem:[#allocation7 + $0x20] sm:$0xff]
    %v94 = vld [vmem:[#allocation7 + $0x28] sm:$0xff]
    %v95 = vld [vmem:[#allocation7 + $0x30] sm:$0xff]
    %v96 = vld [vmem:[#allocation7 + $0x38] sm:$0xff]
    %v97 = vld [vmem:[#allocation7 + $0x40] sm:$0xff]
    %v98 = vld [vmem:[#allocation7 + $0x48] sm:$0xff]
    %v99 = vld [vmem:[#allocation7 + $0x50] sm:$0xff]
    %v100 = vld [vmem:[#allocation7 + $0x58] sm:$0xff]
    %v101 = vld [vmem:[#allocation7 + $0x60] sm:$0xff]
    %v102 = vld [vmem:[#allocation7 + $0x68] sm:$0xff]
    %v103 = vld [vmem:[#allocation7 + $0x70] sm:$0xff]
    %v104 = vld [vmem:[#allocation7 + $0x78] sm:$0xff]
    %v105 = vld [vmem:[#allocation7 + $0x80] sm:$0xff]
    %v106 = vld [vmem:[#allocation7 + $0x88] sm:$0xff]
    %v107 = vld [vmem:[#allocation7 + $0x90] sm:$0xff]
    %v108 = vld [vmem:[#allocation7 + $0x98] sm:$0xff]
    %v109 = vld [vmem:[#allocation7 + $0xa0] sm:$0xff]
    %v110 = vld [vmem:[#allocation7 + $0xa8] sm:$0xff]
    %v111 = vld [vmem:[#allocation7 + $0xb0] sm:$0xff]
    %v112 = vld [vmem:[#allocation7 + $0xb8] sm:$0xff]
    %v113 = vld [vmem:[#allocation7 + $0xc0] sm:$0xff]
    %v114 = vld [vmem:[#allocation7 + $0xc8] sm:$0xff]
    %v115 = vld [vmem:[#allocation7 + $0xd0] sm:$0xff]
    %v116 = vld [vmem:[#allocation7 + $0xd8] sm:$0xff]
    %v117 = vld [vmem:[#allocation7 + $0xe0] sm:$0xff]
    %v118 = vld [vmem:[#allocation7 + $0xe8] sm:$0xff]
    %v119 = vld [vmem:[#allocation7 + $0xf0] sm:$0xff]
    %v120 = vld [vmem:[#allocation7 + $0xf8] sm:$0xff]
    %v121 = vld [vmem:[#allocation7 + $0x100] sm:$0xff]
    %v122 = vld [vmem:[#allocation7 + $0x108] sm:$0xff]
    %v123 = vld [vmem:[#allocation7 + $0x110] sm:$0xff]
    %v124 = vld [vmem:[#allocation7 + $0x118] sm:$0xff]
    %v125 = vld [vmem:[#allocation7 + $0x120] sm:$0xff]
    %v126 = vld [vmem:[#allocation7 + $0x128] sm:$0xff]
    %v127 = vld [vmem:[#allocation7 + $0x130] sm:$0xff]
    %v128 = vld [vmem:[#allocation7 + $0x138] sm:$0xff]
    %v129 = vld [vmem:[#allocation7 + $0x140] sm:$0xff]
    %v130 = vld [vmem:[#allocation7 + $0x148] sm:$0xff]
    %v131 = vld [vmem:[#allocation7 + $0x150] sm:$0xff]
    %v132 = vld [vmem:[#allocation7 + $0x158] sm:$0xff]
    %v133 = vld [vmem:[#allocation7 + $0x160] sm:$0xff]
    %v134 = vld [vmem:[#allocation7 + $0x168] sm:$0xff]
    %v135 = vld [vmem:[#allocation7 + $0x170] sm:$0xff]
    %v136 = vld [vmem:[#allocation7 + $0x178] sm:$0xff]
    %v137 = vld [vmem:[#allocation7 + $0x180] sm:$0xff]
    %v138 = vld [vmem:[#allocation7 + $0x188] sm:$0xff]
    %v139 = vld [vmem:[#allocation7 + $0x190] sm:$0xff]
    %v140 = vld [vmem:[#allocation7 + $0x198] sm:$0xff]
    %v141 = vld [vmem:[#allocation7 + $0x1a0] sm:$0xff]
    %v142 = vld [vmem:[#allocation7 + $0x1a8] sm:$0xff]
    %v143 = vld [vmem:[#allocation7 + $0x1b0] sm:$0xff]
    %v144 = vld [vmem:[#allocation7 + $0x1b8] sm:$0xff]
    %v145 = vld [vmem:[#allocation7 + $0x1c0] sm:$0xff]
    %v146 = vld [vmem:[#allocation7 + $0x1c8] sm:$0xff]
    %v147 = vld [vmem:[#allocation7 + $0x1d0] sm:$0xff]
    %v148 = vld [vmem:[#allocation7 + $0x1d8] sm:$0xff]
    %v149 = vld [vmem:[#allocation7 + $0x1e0] sm:$0xff]
    %v150 = vld [vmem:[#allocation7 + $0x1e8] sm:$0xff]
    %v151 = vld [vmem:[#allocation7 + $0x1f0] sm:$0xff]
    %v152 = vld [vmem:[#allocation7 + $0x1f8] sm:$0xff]
    %v153 = vld [vmem:[#allocation7 + $0x200] sm:$0xff]
    %v154 = vld [vmem:[#allocation7 + $0x208] sm:$0xff]
    %v155 = vld [vmem:[#allocation7 + $0x210] sm:$0xff]
    %v156 = vld [vmem:[#allocation7 + $0x218] sm:$0xff]
    %v157 = vld [vmem:[#allocation7 + $0x220] sm:$0xff]
    %v158 = vld [vmem:[#allocation7 + $0x228] sm:$0xff]
    %v159 = vld [vmem:[#allocation7 + $0x230] sm:$0xff]
    %v160 = vld [vmem:[#allocation7 + $0x238] sm:$0xff]
    %v161 = vld [vmem:[#allocation7 + $0x240] sm:$0xff]
    %v162 = vld [vmem:[#allocation7 + $0x248] sm:$0xff]
    %v163 = vld [vmem:[#allocation7 + $0x250] sm:$0xff]
    %v164 = vld [vmem:[#allocation7 + $0x258] sm:$0xff]
    %v165 = vld [vmem:[#allocation7 + $0x260] sm:$0xff]
    %v166 = vld [vmem:[#allocation7 + $0x268] sm:$0xff]
    %v167 = vld [vmem:[#allocation7 + $0x270] sm:$0xff]
    %v168 = vld [vmem:[#allocation7 + $0x278] sm:$0xff]
    %v169 = vld [vmem:[#allocation7 + $0x280] sm:$0xff]
    %v170 = vld [vmem:[#allocation7 + $0x288] sm:$0xff]
    %v171 = vld [vmem:[#allocation7 + $0x290] sm:$0xff]
    %v172 = vld [vmem:[#allocation7 + $0x298] sm:$0xff]
    %v173 = vld [vmem:[#allocation7 + $0x2a0] sm:$0xff]
    %v174 = vld [vmem:[#allocation7 + $0x2a8] sm:$0xff]
    %v175 = vld [vmem:[#allocation7 + $0x2b0] sm:$0xff]
    %v176 = vld [vmem:[#allocation7 + $0x2b8] sm:$0xff]
    %v177 = vld [vmem:[#allocation7 + $0x2c0] sm:$0xff]
    %v178 = vld [vmem:[#allocation7 + $0x2c8] sm:$0xff]
    %v179 = vld [vmem:[#allocation7 + $0x2d0] sm:$0xff]
    %v180 = vld [vmem:[#allocation7 + $0x2d8] sm:$0xff]
    %v181 = vld [vmem:[#allocation7 + $0x2e0] sm:$0xff]
    %v182 = vld [vmem:[#allocation7 + $0x2e8] sm:$0xff]
    %v183 = vld [vmem:[#allocation7 + $0x2f0] sm:$0xff]
    %v184 = vld [vmem:[#allocation7 + $0x2f8] sm:$0xff]
    %v185 = vld [vmem:[#allocation7 + $0x300] sm:$0xff]
    %v186 = vld [vmem:[#allocation7 + $0x308] sm:$0xff]
    %v187 = vld [vmem:[#allocation7 + $0x310] sm:$0xff]
    %v188 = vld [vmem:[#allocation7 + $0x318] sm:$0xff]
    %v189 = vld [vmem:[#allocation7 + $0x320] sm:$0xff]
    %v190 = vld [vmem:[#allocation7 + $0x328] sm:$0xff]
    %v191 = vld [vmem:[#allocation7 + $0x330] sm:$0xff]
    %v192 = vld [vmem:[#allocation7 + $0x338] sm:$0xff]
    %v193 = vld [vmem:[#allocation7 + $0x340] sm:$0xff]
    %v194 = vld [vmem:[#allocation7 + $0x348] sm:$0xff]
    %v195 = vld [vmem:[#allocation7 + $0x350] sm:$0xff]
    %v196 = vld [vmem:[#allocation7 + $0x358] sm:$0xff]
    %v197 = vld [vmem:[#allocation7 + $0x360] sm:$0xff]
    %v198 = vld [vmem:[#allocation7 + $0x368] sm:$0xff]
    %v199 = vld [vmem:[#allocation7 + $0x370] sm:$0xff]
    %v200 = vld [vmem:[#allocation7 + $0x378] sm:$0xff]
    %v201 = vld [vmem:[#allocation7 + $0x380] sm:$0xff]
    %v202 = vld [vmem:[#allocation7 + $0x388] sm:$0xff]
    %v203 = vld [vmem:[#allocation7 + $0x390] sm:$0xff]
    %v204 = vld [vmem:[#allocation7 + $0x398] sm:$0xff]
    %v205 = vld [vmem:[#allocation7 + $0x3a0] sm:$0xff]
    %v206 = vld [vmem:[#allocation7 + $0x3a8] sm:$0xff]
    %v207 = vld [vmem:[#allocation7 + $0x3b0] sm:$0xff]
    %v208 = vld [vmem:[#allocation7 + $0x3b8] sm:$0xff]
    %v209 = vld [vmem:[#allocation7 + $0x3c0] sm:$0xff]
    %v210 = vld [vmem:[#allocation7 + $0x3c8] sm:$0xff]
    %v211 = vld [vmem:[#allocation7 + $0x3d0] sm:$0xff]
    %v212 = vld [vmem:[#allocation7 + $0x3d8] sm:$0xff]
    %v213 = vld [vmem:[#allocation7 + $0x3e0] sm:$0xff]
    %v214 = vld [vmem:[#allocation7 + $0x3e8] sm:$0xff]
    %v215 = vld [vmem:[#allocation7 + $0x3f0] sm:$0xff]
    %v216 = vld [vmem:[#allocation7 + $0x3f8] sm:$0xff]
    %217 = vmatpush.xpose.msra.mxu0 %v149
    %218 = vmatpush.xpose.msra.mxu0 %v145
    %219 = vmatpush.xpose.msra.mxu0 %v141
    %220 = vmatpush.xpose.msra.mxu0 %v137
    %221 = vmatpush.xpose.msra.mxu0 %v133
    %222 = vmatpush.xpose.msra.mxu0 %v129
    %223 = vmatpush.xpose.msra.mxu0 %v125
    %224 = vmatpush.xpose.msra.mxu0 %v121
    %225 = vmatpush.xpose.msra.mxu0 %v117
    %226 = vmatpush.xpose.msra.mxu0 %v113
    %227 = vmatpush.xpose.msra.mxu0 %v109
    %228 = vmatpush.xpose.msra.mxu0 %v105
    %229 = vmatpush.xpose.msra.mxu0 %v101
    %230 = vmatpush.xpose.msra.mxu0 %v97
    %231 = vmatpush.xpose.msra.mxu0 %v93
    %232 = vmatpush.xpose.msra.mxu0 %v89
    %233 = vmatmul.f32.gmra.mxu0 %v77
    %v234 = vpop.f32.mrf.mxu0
    %v235 = vadd.f32 0.0, %v234
    %236 = vmatmul.f32.gmra.mxu0 %v81
    %v237 = vpop.f32.mrf.mxu0
    %v238 = vadd.f32 0.0, %v237
    %239 = vdwg.mxu0
    %240 = vmatpush.xpose.msra.mxu0 %v150
    %241 = vmatpush.xpose.msra.mxu0 %v146
    %242 = vmatpush.xpose.msra.mxu0 %v142
    %243 = vmatpush.xpose.msra.mxu0 %v138
    %244 = vmatpush.xpose.msra.mxu0 %v134
    %245 = vmatpush.xpose.msra.mxu0 %v130
    %246 = vmatpush.xpose.msra.mxu0 %v126
    %247 = vmatpush.xpose.msra.mxu0 %v122
    %248 = vmatpush.xpose.msra.mxu0 %v118
    %249 = vmatpush.xpose.msra.mxu0 %v114
    %250 = vmatpush.xpose.msra.mxu0 %v110
    %251 = vmatpush.xpose.msra.mxu0 %v106
    %252 = vmatpush.xpose.msra.mxu0 %v102
    %253 = vmatpush.xpose.msra.mxu0 %v98
    %254 = vmatpush.xpose.msra.mxu0 %v94
    %255 = vmatpush.xpose.msra.mxu0 %v90
    %256 = vmatmul.f32.gmra.mxu0 %v78
    %v257 = vpop.f32.mrf.mxu0
    %v258 = vadd.f32 %v235, %v257
    %259 = vmatmul.f32.gmra.mxu0 %v82
    %v260 = vpop.f32.mrf.mxu0
    %v261 = vadd.f32 %v238, %v260
    %262 = vdwg.mxu0
    %263 = vmatpush.xpose.msra.mxu0 %v151
    %264 = vmatpush.xpose.msra.mxu0 %v147
    %265 = vmatpush.xpose.msra.mxu0 %v143
    %266 = vmatpush.xpose.msra.mxu0 %v139
    %267 = vmatpush.xpose.msra.mxu0 %v135
    %268 = vmatpush.xpose.msra.mxu0 %v131
    %269 = vmatpush.xpose.msra.mxu0 %v127
    %270 = vmatpush.xpose.msra.mxu0 %v123
    %271 = vmatpush.xpose.msra.mxu0 %v119
    %272 = vmatpush.xpose.msra.mxu0 %v115
    %273 = vmatpush.xpose.msra.mxu0 %v111
    %274 = vmatpush.xpose.msra.mxu0 %v107
    %275 = vmatpush.xpose.msra.mxu0 %v103
    %276 = vmatpush.xpose.msra.mxu0 %v99
    %277 = vmatpush.xpose.msra.mxu0 %v95
    %278 = vmatpush.xpose.msra.mxu0 %v91
    %279 = vmatmul.f32.gmra.mxu0 %v79
    %v280 = vpop.f32.mrf.mxu0
    %v281 = vadd.f32 %v258, %v280
    %282 = vmatmul.f32.gmra.mxu0 %v83
    %v283 = vpop.f32.mrf.mxu0
    %v284 = vadd.f32 %v261, %v283
    %285 = vdwg.mxu0
    %286 = vmatpush.xpose.msra.mxu0 %v152
    %287 = vmatpush.xpose.msra.mxu0 %v148
    %288 = vmatpush.xpose.msra.mxu0 %v144
    %289 = vmatpush.xpose.msra.mxu0 %v140
    %290 = vmatpush.xpose.msra.mxu0 %v136
    %291 = vmatpush.xpose.msra.mxu0 %v132
    %292 = vmatpush.xpose.msra.mxu0 %v128
    %293 = vmatpush.xpose.msra.mxu0 %v124
    %294 = vmatpush.xpose.msra.mxu0 %v120
    %295 = vmatpush.xpose.msra.mxu0 %v116
    %296 = vmatpush.xpose.msra.mxu0 %v112
    %297 = vmatpush.xpose.msra.mxu0 %v108
    %298 = vmatpush.xpose.msra.mxu0 %v104
    %299 = vmatpush.xpose.msra.mxu0 %v100
    %300 = vmatpush.xpose.msra.mxu0 %v96
    %301 = vmatpush.xpose.msra.mxu0 %v92
    %302 = vmatmul.f32.gmra.mxu0 %v80
    %v303 = vpop.f32.mrf.mxu0
    %v304 = vadd.f32 %v281, %v303
    %305 = vmatmul.f32.gmra.mxu0 %v84
    %v306 = vpop.f32.mrf.mxu0
    %v307 = vadd.f32 %v284, %v306
    %308 = vdwg.mxu0
    %309 = vmatpush.xpose.msra.mxu0 %v213
    %310 = vmatpush.xpose.msra.mxu0 %v209
    %311 = vmatpush.xpose.msra.mxu0 %v205
    %312 = vmatpush.xpose.msra.mxu0 %v201
    %313 = vmatpush.xpose.msra.mxu0 %v197
    %314 = vmatpush.xpose.msra.mxu0 %v193
    %315 = vmatpush.xpose.msra.mxu0 %v189
    %316 = vmatpush.xpose.msra.mxu0 %v185
    %317 = vmatpush.xpose.msra.mxu0 %v181
    %318 = vmatpush.xpose.msra.mxu0 %v177
    %319 = vmatpush.xpose.msra.mxu0 %v173
    %320 = vmatpush.xpose.msra.mxu0 %v169
    %321 = vmatpush.xpose.msra.mxu0 %v165
    %322 = vmatpush.xpose.msra.mxu0 %v161
    %323 = vmatpush.xpose.msra.mxu0 %v157
    %324 = vmatpush.xpose.msra.mxu0 %v153
    %325 = vmatmul.f32.gmra.mxu0 %v77
    %v326 = vpop.f32.mrf.mxu0
    %v327 = vadd.f32 0.0, %v326
    %328 = vmatmul.f32.gmra.mxu0 %v81
    %v329 = vpop.f32.mrf.mxu0
    %v330 = vadd.f32 0.0, %v329
    %331 = vdwg.mxu0
    %332 = vmatpush.xpose.msra.mxu0 %v214
    %333 = vmatpush.xpose.msra.mxu0 %v210
    %334 = vmatpush.xpose.msra.mxu0 %v206
    %335 = vmatpush.xpose.msra.mxu0 %v202
    %336 = vmatpush.xpose.msra.mxu0 %v198
    %337 = vmatpush.xpose.msra.mxu0 %v194
    %338 = vmatpush.xpose.msra.mxu0 %v190
    %339 = vmatpush.xpose.msra.mxu0 %v186
    %340 = vmatpush.xpose.msra.mxu0 %v182
    %341 = vmatpush.xpose.msra.mxu0 %v178
    %342 = vmatpush.xpose.msra.mxu0 %v174
    %343 = vmatpush.xpose.msra.mxu0 %v170
    %344 = vmatpush.xpose.msra.mxu0 %v166
    %345 = vmatpush.xpose.msra.mxu0 %v162
    %346 = vmatpush.xpose.msra.mxu0 %v158
    %347 = vmatpush.xpose.msra.mxu0 %v154
    %348 = vmatmul.f32.gmra.mxu0 %v78
    %v349 = vpop.f32.mrf.mxu0
    %v350 = vadd.f32 %v327, %v349
    %351 = vmatmul.f32.gmra.mxu0 %v82
    %v352 = vpop.f32.mrf.mxu0
    %v353 = vadd.f32 %v330, %v352
    %354 = vdwg.mxu0
    %355 = vmatpush.xpose.msra.mxu0 %v215
    %356 = vmatpush.xpose.msra.mxu0 %v211
    %357 = vmatpush.xpose.msra.mxu0 %v207
    %358 = vmatpush.xpose.msra.mxu0 %v203
    %359 = vmatpush.xpose.msra.mxu0 %v199
    %360 = vmatpush.xpose.msra.mxu0 %v195
    %361 = vmatpush.xpose.msra.mxu0 %v191
    %362 = vmatpush.xpose.msra.mxu0 %v187
    %363 = vmatpush.xpose.msra.mxu0 %v183
    %364 = vmatpush.xpose.msra.mxu0 %v179
    %365 = vmatpush.xpose.msra.mxu0 %v175
    %366 = vmatpush.xpose.msra.mxu0 %v171
    %367 = vmatpush.xpose.msra.mxu0 %v167
    %368 = vmatpush.xpose.msra.mxu0 %v163
    %369 = vmatpush.xpose.msra.mxu0 %v159
    %370 = vmatpush.xpose.msra.mxu0 %v155
    %371 = vmatmul.f32.gmra.mxu0 %v79
    %v372 = vpop.f32.mrf.mxu0
    %v373 = vadd.f32 %v350, %v372
    %374 = vmatmul.f32.gmra.mxu0 %v83
    %v375 = vpop.f32.mrf.mxu0
    %v376 = vadd.f32 %v353, %v375
    %377 = vdwg.mxu0
    %378 = vmatpush.xpose.msra.mxu0 %v216
    %379 = vmatpush.xpose.msra.mxu0 %v212
    %380 = vmatpush.xpose.msra.mxu0 %v208
    %381 = vmatpush.xpose.msra.mxu0 %v204
    %382 = vmatpush.xpose.msra.mxu0 %v200
    %383 = vmatpush.xpose.msra.mxu0 %v196
    %384 = vmatpush.xpose.msra.mxu0 %v192
    %385 = vmatpush.xpose.msra.mxu0 %v188
    %386 = vmatpush.xpose.msra.mxu0 %v184
    %387 = vmatpush.xpose.msra.mxu0 %v180
    %388 = vmatpush.xpose.msra.mxu0 %v176
    %389 = vmatpush.xpose.msra.mxu0 %v172
    %390 = vmatpush.xpose.msra.mxu0 %v168
    %391 = vmatpush.xpose.msra.mxu0 %v164
    %392 = vmatpush.xpose.msra.mxu0 %v160
    %393 = vmatpush.xpose.msra.mxu0 %v156
    %394 = vmatmul.f32.gmra.mxu0 %v80
    %v395 = vpop.f32.mrf.mxu0
    %v396 = vadd.f32 %v373, %v395
    %397 = vmatmul.f32.gmra.mxu0 %v84
    %v398 = vpop.f32.mrf.mxu0
    %v399 = vadd.f32 %v376, %v398
    %400 = vdwg.mxu0
    %v401 = vadd.f32 %v85, %v304
    %v402 = vadd.f32 %v86, %v396
    %v403 = vadd.f32 %v87, %v307
    %v404 = vadd.f32 %v88, %v399
    %405 = vst [vmem:[#allocation2] sm:$0xff] %v401
    %406 = vst [vmem:[#allocation2 + $0x8] sm:$0xff] %v402
    %407 = vst [vmem:[#allocation2 + $0x10] sm:$0xff] %v403
    %408 = vst [vmem:[#allocation2 + $0x18] sm:$0xff] %v404
    %v409 = vld [vmem:[#allocation3] sm:$0xff]
    %v410 = vld [vmem:[#allocation3 + $0x8] sm:$0xff]
    %v411 = vld [vmem:[#allocation3 + $0x10] sm:$0xff]
    %v412 = vld [vmem:[#allocation3 + $0x18] sm:$0xff]
    %v413 = vld [vmem:[#allocation9] sm:$0xff]
    %v414 = vld [vmem:[#allocation9 + $0x8] sm:$0xff]
    %v415 = vld [vmem:[#allocation9 + $0x10] sm:$0xff]
    %v416 = vld [vmem:[#allocation9 + $0x18] sm:$0xff]
    %v417 = vld [vmem:[#allocation9 + $0x20] sm:$0xff]
    %v418 = vld [vmem:[#allocation9 + $0x28] sm:$0xff]
    %v419 = vld [vmem:[#allocation9 + $0x30] sm:$0xff]
    %v420 = vld [vmem:[#allocation9 + $0x38] sm:$0xff]
    %v421 = vld [vmem:[#allocation9 + $0x40] sm:$0xff]
    %v422 = vld [vmem:[#allocation9 + $0x48] sm:$0xff]
    %v423 = vld [vmem:[#allocation9 + $0x50] sm:$0xff]
    %v424 = vld [vmem:[#allocation9 + $0x58] sm:$0xff]
    %v425 = vld [vmem:[#allocation9 + $0x60] sm:$0xff]
    %v426 = vld [vmem:[#allocation9 + $0x68] sm:$0xff]
    %v427 = vld [vmem:[#allocation9 + $0x70] sm:$0xff]
    %v428 = vld [vmem:[#allocation9 + $0x78] sm:$0xff]
    %v429 = vld [vmem:[#allocation9 + $0x80] sm:$0xff]
    %v430 = vld [vmem:[#allocation9 + $0x88] sm:$0xff]
    %v431 = vld [vmem:[#allocation9 + $0x90] sm:$0xff]
    %v432 = vld [vmem:[#allocation9 + $0x98] sm:$0xff]
    %v433 = vld [vmem:[#allocation9 + $0xa0] sm:$0xff]
    %v434 = vld [vmem:[#allocation9 + $0xa8] sm:$0xff]
    %v435 = vld [vmem:[#allocation9 + $0xb0] sm:$0xff]
    %v436 = vld [vmem:[#allocation9 + $0xb8] sm:$0xff]
    %v437 = vld [vmem:[#allocation9 + $0xc0] sm:$0xff]
    %v438 = vld [vmem:[#allocation9 + $0xc8] sm:$0xff]
    %v439 = vld [vmem:[#allocation9 + $0xd0] sm:$0xff]
    %v440 = vld [vmem:[#allocation9 + $0xd8] sm:$0xff]
    %v441 = vld [vmem:[#allocation9 + $0xe0] sm:$0xff]
    %v442 = vld [vmem:[#allocation9 + $0xe8] sm:$0xff]
    %v443 = vld [vmem:[#allocation9 + $0xf0] sm:$0xff]
    %v444 = vld [vmem:[#allocation9 + $0xf8] sm:$0xff]
    %v445 = vld [vmem:[#allocation9 + $0x100] sm:$0xff]
    %v446 = vld [vmem:[#allocation9 + $0x108] sm:$0xff]
    %v447 = vld [vmem:[#allocation9 + $0x110] sm:$0xff]
    %v448 = vld [vmem:[#allocation9 + $0x118] sm:$0xff]
    %v449 = vld [vmem:[#allocation9 + $0x120] sm:$0xff]
    %v450 = vld [vmem:[#allocation9 + $0x128] sm:$0xff]
    %v451 = vld [vmem:[#allocation9 + $0x130] sm:$0xff]
    %v452 = vld [vmem:[#allocation9 + $0x138] sm:$0xff]
    %v453 = vld [vmem:[#allocation9 + $0x140] sm:$0xff]
    %v454 = vld [vmem:[#allocation9 + $0x148] sm:$0xff]
    %v455 = vld [vmem:[#allocation9 + $0x150] sm:$0xff]
    %v456 = vld [vmem:[#allocation9 + $0x158] sm:$0xff]
    %v457 = vld [vmem:[#allocation9 + $0x160] sm:$0xff]
    %v458 = vld [vmem:[#allocation9 + $0x168] sm:$0xff]
    %v459 = vld [vmem:[#allocation9 + $0x170] sm:$0xff]
    %v460 = vld [vmem:[#allocation9 + $0x178] sm:$0xff]
    %v461 = vld [vmem:[#allocation9 + $0x180] sm:$0xff]
    %v462 = vld [vmem:[#allocation9 + $0x188] sm:$0xff]
    %v463 = vld [vmem:[#allocation9 + $0x190] sm:$0xff]
    %v464 = vld [vmem:[#allocation9 + $0x198] sm:$0xff]
    %v465 = vld [vmem:[#allocation9 + $0x1a0] sm:$0xff]
    %v466 = vld [vmem:[#allocation9 + $0x1a8] sm:$0xff]
    %v467 = vld [vmem:[#allocation9 + $0x1b0] sm:$0xff]
    %v468 = vld [vmem:[#allocation9 + $0x1b8] sm:$0xff]
    %v469 = vld [vmem:[#allocation9 + $0x1c0] sm:$0xff]
    %v470 = vld [vmem:[#allocation9 + $0x1c8] sm:$0xff]
    %v471 = vld [vmem:[#allocation9 + $0x1d0] sm:$0xff]
    %v472 = vld [vmem:[#allocation9 + $0x1d8] sm:$0xff]
    %v473 = vld [vmem:[#allocation9 + $0x1e0] sm:$0xff]
    %v474 = vld [vmem:[#allocation9 + $0x1e8] sm:$0xff]
    %v475 = vld [vmem:[#allocation9 + $0x1f0] sm:$0xff]
    %v476 = vld [vmem:[#allocation9 + $0x1f8] sm:$0xff]
    %v477 = vld [vmem:[#allocation9 + $0x200] sm:$0xff]
    %v478 = vld [vmem:[#allocation9 + $0x208] sm:$0xff]
    %v479 = vld [vmem:[#allocation9 + $0x210] sm:$0xff]
    %v480 = vld [vmem:[#allocation9 + $0x218] sm:$0xff]
    %v481 = vld [vmem:[#allocation9 + $0x220] sm:$0xff]
    %v482 = vld [vmem:[#allocation9 + $0x228] sm:$0xff]
    %v483 = vld [vmem:[#allocation9 + $0x230] sm:$0xff]
    %v484 = vld [vmem:[#allocation9 + $0x238] sm:$0xff]
    %v485 = vld [vmem:[#allocation9 + $0x240] sm:$0xff]
    %v486 = vld [vmem:[#allocation9 + $0x248] sm:$0xff]
    %v487 = vld [vmem:[#allocation9 + $0x250] sm:$0xff]
    %v488 = vld [vmem:[#allocation9 + $0x258] sm:$0xff]
    %v489 = vld [vmem:[#allocation9 + $0x260] sm:$0xff]
    %v490 = vld [vmem:[#allocation9 + $0x268] sm:$0xff]
    %v491 = vld [vmem:[#allocation9 + $0x270] sm:$0xff]
    %v492 = vld [vmem:[#allocation9 + $0x278] sm:$0xff]
    %v493 = vld [vmem:[#allocation9 + $0x280] sm:$0xff]
    %v494 = vld [vmem:[#allocation9 + $0x288] sm:$0xff]
    %v495 = vld [vmem:[#allocation9 + $0x290] sm:$0xff]
    %v496 = vld [vmem:[#allocation9 + $0x298] sm:$0xff]
    %v497 = vld [vmem:[#allocation9 + $0x2a0] sm:$0xff]
    %v498 = vld [vmem:[#allocation9 + $0x2a8] sm:$0xff]
    %v499 = vld [vmem:[#allocation9 + $0x2b0] sm:$0xff]
    %v500 = vld [vmem:[#allocation9 + $0x2b8] sm:$0xff]
    %v501 = vld [vmem:[#allocation9 + $0x2c0] sm:$0xff]
    %v502 = vld [vmem:[#allocation9 + $0x2c8] sm:$0xff]
    %v503 = vld [vmem:[#allocation9 + $0x2d0] sm:$0xff]
    %v504 = vld [vmem:[#allocation9 + $0x2d8] sm:$0xff]
    %v505 = vld [vmem:[#allocation9 + $0x2e0] sm:$0xff]
    %v506 = vld [vmem:[#allocation9 + $0x2e8] sm:$0xff]
    %v507 = vld [vmem:[#allocation9 + $0x2f0] sm:$0xff]
    %v508 = vld [vmem:[#allocation9 + $0x2f8] sm:$0xff]
    %v509 = vld [vmem:[#allocation9 + $0x300] sm:$0xff]
    %v510 = vld [vmem:[#allocation9 + $0x308] sm:$0xff]
    %v511 = vld [vmem:[#allocation9 + $0x310] sm:$0xff]
    %v512 = vld [vmem:[#allocation9 + $0x318] sm:$0xff]
    %v513 = vld [vmem:[#allocation9 + $0x320] sm:$0xff]
    %v514 = vld [vmem:[#allocation9 + $0x328] sm:$0xff]
    %v515 = vld [vmem:[#allocation9 + $0x330] sm:$0xff]
    %v516 = vld [vmem:[#allocation9 + $0x338] sm:$0xff]
    %v517 = vld [vmem:[#allocation9 + $0x340] sm:$0xff]
    %v518 = vld [vmem:[#allocation9 + $0x348] sm:$0xff]
    %v519 = vld [vmem:[#allocation9 + $0x350] sm:$0xff]
    %v520 = vld [vmem:[#allocation9 + $0x358] sm:$0xff]
    %v521 = vld [vmem:[#allocation9 + $0x360] sm:$0xff]
    %v522 = vld [vmem:[#allocation9 + $0x368] sm:$0xff]
    %v523 = vld [vmem:[#allocation9 + $0x370] sm:$0xff]
    %v524 = vld [vmem:[#allocation9 + $0x378] sm:$0xff]
    %v525 = vld [vmem:[#allocation9 + $0x380] sm:$0xff]
    %v526 = vld [vmem:[#allocation9 + $0x388] sm:$0xff]
    %v527 = vld [vmem:[#allocation9 + $0x390] sm:$0xff]
    %v528 = vld [vmem:[#allocation9 + $0x398] sm:$0xff]
    %v529 = vld [vmem:[#allocation9 + $0x3a0] sm:$0xff]
    %v530 = vld [vmem:[#allocation9 + $0x3a8] sm:$0xff]
    %v531 = vld [vmem:[#allocation9 + $0x3b0] sm:$0xff]
    %v532 = vld [vmem:[#allocation9 + $0x3b8] sm:$0xff]
    %v533 = vld [vmem:[#allocation9 + $0x3c0] sm:$0xff]
    %v534 = vld [vmem:[#allocation9 + $0x3c8] sm:$0xff]
    %v535 = vld [vmem:[#allocation9 + $0x3d0] sm:$0xff]
    %v536 = vld [vmem:[#allocation9 + $0x3d8] sm:$0xff]
    %v537 = vld [vmem:[#allocation9 + $0x3e0] sm:$0xff]
    %v538 = vld [vmem:[#allocation9 + $0x3e8] sm:$0xff]
    %v539 = vld [vmem:[#allocation9 + $0x3f0] sm:$0xff]
    %v540 = vld [vmem:[#allocation9 + $0x3f8] sm:$0xff]
    %541 = vmatpush.xpose.msra.mxu0 %v473
    %542 = vmatpush.xpose.msra.mxu0 %v469
    %543 = vmatpush.xpose.msra.mxu0 %v465
    %544 = vmatpush.xpose.msra.mxu0 %v461
    %545 = vmatpush.xpose.msra.mxu0 %v457
    %546 = vmatpush.xpose.msra.mxu0 %v453
    %547 = vmatpush.xpose.msra.mxu0 %v449
    %548 = vmatpush.xpose.msra.mxu0 %v445
    %549 = vmatpush.xpose.msra.mxu0 %v441
    %550 = vmatpush.xpose.msra.mxu0 %v437
    %551 = vmatpush.xpose.msra.mxu0 %v433
    %552 = vmatpush.xpose.msra.mxu0 %v429
    %553 = vmatpush.xpose.msra.mxu0 %v425
    %554 = vmatpush.xpose.msra.mxu0 %v421
    %555 = vmatpush.xpose.msra.mxu0 %v417
    %556 = vmatpush.xpose.msra.mxu0 %v413
    %557 = vmatmul.f32.gmra.mxu0 %v77
    %v558 = vpop.f32.mrf.mxu0
    %v559 = vadd.f32 0.0, %v558
    %560 = vmatmul.f32.gmra.mxu0 %v81
    %v561 = vpop.f32.mrf.mxu0
    %v562 = vadd.f32 0.0, %v561
    %563 = vdwg.mxu0
    %564 = vmatpush.xpose.msra.mxu0 %v474
    %565 = vmatpush.xpose.msra.mxu0 %v470
    %566 = vmatpush.xpose.msra.mxu0 %v466
    %567 = vmatpush.xpose.msra.mxu0 %v462
    %568 = vmatpush.xpose.msra.mxu0 %v458
    %569 = vmatpush.xpose.msra.mxu0 %v454
    %570 = vmatpush.xpose.msra.mxu0 %v450
    %571 = vmatpush.xpose.msra.mxu0 %v446
    %572 = vmatpush.xpose.msra.mxu0 %v442
    %573 = vmatpush.xpose.msra.mxu0 %v438
    %574 = vmatpush.xpose.msra.mxu0 %v434
    %575 = vmatpush.xpose.msra.mxu0 %v430
    %576 = vmatpush.xpose.msra.mxu0 %v426
    %577 = vmatpush.xpose.msra.mxu0 %v422
    %578 = vmatpush.xpose.msra.mxu0 %v418
    %579 = vmatpush.xpose.msra.mxu0 %v414
    %580 = vmatmul.f32.gmra.mxu0 %v78
    %v581 = vpop.f32.mrf.mxu0
    %v582 = vadd.f32 %v559, %v581
    %583 = vmatmul.f32.gmra.mxu0 %v82
    %v584 = vpop.f32.mrf.mxu0
    %v585 = vadd.f32 %v562, %v584
    %586 = vdwg.mxu0
    %587 = vmatpush.xpose.msra.mxu0 %v475
    %588 = vmatpush.xpose.msra.mxu0 %v471
    %589 = vmatpush.xpose.msra.mxu0 %v467
    %590 = vmatpush.xpose.msra.mxu0 %v463
    %591 = vmatpush.xpose.msra.mxu0 %v459
    %592 = vmatpush.xpose.msra.mxu0 %v455
    %593 = vmatpush.xpose.msra.mxu0 %v451
    %594 = vmatpush.xpose.msra.mxu0 %v447
    %595 = vmatpush.xpose.msra.mxu0 %v443
    %596 = vmatpush.xpose.msra.mxu0 %v439
    %597 = vmatpush.xpose.msra.mxu0 %v435
    %598 = vmatpush.xpose.msra.mxu0 %v431
    %599 = vmatpush.xpose.msra.mxu0 %v427
    %600 = vmatpush.xpose.msra.mxu0 %v423
    %601 = vmatpush.xpose.msra.mxu0 %v419
    %602 = vmatpush.xpose.msra.mxu0 %v415
    %603 = vmatmul.f32.gmra.mxu0 %v79
    %v604 = vpop.f32.mrf.mxu0
    %v605 = vadd.f32 %v582, %v604
    %606 = vmatmul.f32.gmra.mxu0 %v83
    %v607 = vpop.f32.mrf.mxu0
    %v608 = vadd.f32 %v585, %v607
    %609 = vdwg.mxu0
    %610 = vmatpush.xpose.msra.mxu0 %v476
    %611 = vmatpush.xpose.msra.mxu0 %v472
    %612 = vmatpush.xpose.msra.mxu0 %v468
    %613 = vmatpush.xpose.msra.mxu0 %v464
    %614 = vmatpush.xpose.msra.mxu0 %v460
    %615 = vmatpush.xpose.msra.mxu0 %v456
    %616 = vmatpush.xpose.msra.mxu0 %v452
    %617 = vmatpush.xpose.msra.mxu0 %v448
    %618 = vmatpush.xpose.msra.mxu0 %v444
    %619 = vmatpush.xpose.msra.mxu0 %v440
    %620 = vmatpush.xpose.msra.mxu0 %v436
    %621 = vmatpush.xpose.msra.mxu0 %v432
    %622 = vmatpush.xpose.msra.mxu0 %v428
    %623 = vmatpush.xpose.msra.mxu0 %v424
    %624 = vmatpush.xpose.msra.mxu0 %v420
    %625 = vmatpush.xpose.msra.mxu0 %v416
    %626 = vmatmul.f32.gmra.mxu0 %v80
    %v627 = vpop.f32.mrf.mxu0
    %v628 = vadd.f32 %v605, %v627
    %629 = vmatmul.f32.gmra.mxu0 %v84
    %v630 = vpop.f32.mrf.mxu0
    %v631 = vadd.f32 %v608, %v630
    %632 = vdwg.mxu0
    %633 = vmatpush.xpose.msra.mxu0 %v537
    %634 = vmatpush.xpose.msra.mxu0 %v533
    %635 = vmatpush.xpose.msra.mxu0 %v529
    %636 = vmatpush.xpose.msra.mxu0 %v525
    %637 = vmatpush.xpose.msra.mxu0 %v521
    %638 = vmatpush.xpose.msra.mxu0 %v517
    %639 = vmatpush.xpose.msra.mxu0 %v513
    %640 = vmatpush.xpose.msra.mxu0 %v509
    %641 = vmatpush.xpose.msra.mxu0 %v505
    %642 = vmatpush.xpose.msra.mxu0 %v501
    %643 = vmatpush.xpose.msra.mxu0 %v497
    %644 = vmatpush.xpose.msra.mxu0 %v493
    %645 = vmatpush.xpose.msra.mxu0 %v489
    %646 = vmatpush.xpose.msra.mxu0 %v485
    %647 = vmatpush.xpose.msra.mxu0 %v481
    %648 = vmatpush.xpose.msra.mxu0 %v477
    %649 = vmatmul.f32.gmra.mxu0 %v77
    %v650 = vpop.f32.mrf.mxu0
    %v651 = vadd.f32 0.0, %v650
    %652 = vmatmul.f32.gmra.mxu0 %v81
    %v653 = vpop.f32.mrf.mxu0
    %v654 = vadd.f32 0.0, %v653
    %655 = vdwg.mxu0
    %656 = vmatpush.xpose.msra.mxu0 %v538
    %657 = vmatpush.xpose.msra.mxu0 %v534
    %658 = vmatpush.xpose.msra.mxu0 %v530
    %659 = vmatpush.xpose.msra.mxu0 %v526
    %660 = vmatpush.xpose.msra.mxu0 %v522
    %661 = vmatpush.xpose.msra.mxu0 %v518
    %662 = vmatpush.xpose.msra.mxu0 %v514
    %663 = vmatpush.xpose.msra.mxu0 %v510
    %664 = vmatpush.xpose.msra.mxu0 %v506
    %665 = vmatpush.xpose.msra.mxu0 %v502
    %666 = vmatpush.xpose.msra.mxu0 %v498
    %667 = vmatpush.xpose.msra.mxu0 %v494
    %668 = vmatpush.xpose.msra.mxu0 %v490
    %669 = vmatpush.xpose.msra.mxu0 %v486
    %670 = vmatpush.xpose.msra.mxu0 %v482
    %671 = vmatpush.xpose.msra.mxu0 %v478
    %672 = vmatmul.f32.gmra.mxu0 %v78
    %v673 = vpop.f32.mrf.mxu0
    %v674 = vadd.f32 %v651, %v673
    %675 = vmatmul.f32.gmra.mxu0 %v82
    %v676 = vpop.f32.mrf.mxu0
    %v677 = vadd.f32 %v654, %v676
    %678 = vdwg.mxu0
    %679 = vmatpush.xpose.msra.mxu0 %v539
    %680 = vmatpush.xpose.msra.mxu0 %v535
    %681 = vmatpush.xpose.msra.mxu0 %v531
    %682 = vmatpush.xpose.msra.mxu0 %v527
    %683 = vmatpush.xpose.msra.mxu0 %v523
    %684 = vmatpush.xpose.msra.mxu0 %v519
    %685 = vmatpush.xpose.msra.mxu0 %v515
    %686 = vmatpush.xpose.msra.mxu0 %v511
    %687 = vmatpush.xpose.msra.mxu0 %v507
    %688 = vmatpush.xpose.msra.mxu0 %v503
    %689 = vmatpush.xpose.msra.mxu0 %v499
    %690 = vmatpush.xpose.msra.mxu0 %v495
    %691 = vmatpush.xpose.msra.mxu0 %v491
    %692 = vmatpush.xpose.msra.mxu0 %v487
    %693 = vmatpush.xpose.msra.mxu0 %v483
    %694 = vmatpush.xpose.msra.mxu0 %v479
    %695 = vmatmul.f32.gmra.mxu0 %v79
    %v696 = vpop.f32.mrf.mxu0
    %v697 = vadd.f32 %v674, %v696
    %698 = vmatmul.f32.gmra.mxu0 %v83
    %v699 = vpop.f32.mrf.mxu0
    %v700 = vadd.f32 %v677, %v699
    %701 = vdwg.mxu0
    %702 = vmatpush.xpose.msra.mxu0 %v540
    %703 = vmatpush.xpose.msra.mxu0 %v536
    %704 = vmatpush.xpose.msra.mxu0 %v532
    %705 = vmatpush.xpose.msra.mxu0 %v528
    %706 = vmatpush.xpose.msra.mxu0 %v524
    %707 = vmatpush.xpose.msra.mxu0 %v520
    %708 = vmatpush.xpose.msra.mxu0 %v516
    %709 = vmatpush.xpose.msra.mxu0 %v512
    %710 = vmatpush.xpose.msra.mxu0 %v508
    %711 = vmatpush.xpose.msra.mxu0 %v504
    %712 = vmatpush.xpose.msra.mxu0 %v500
    %713 = vmatpush.xpose.msra.mxu0 %v496
    %714 = vmatpush.xpose.msra.mxu0 %v492
    %715 = vmatpush.xpose.msra.mxu0 %v488
    %716 = vmatpush.xpose.msra.mxu0 %v484
    %717 = vmatpush.xpose.msra.mxu0 %v480
    %718 = vmatmul.f32.gmra.mxu0 %v80
    %v719 = vpop.f32.mrf.mxu0
    %v720 = vadd.f32 %v697, %v719
    %721 = vmatmul.f32.gmra.mxu0 %v84
    %v722 = vpop.f32.mrf.mxu0
    %v723 = vadd.f32 %v700, %v722
    %724 = vdwg.mxu0
    %v725 = vadd.f32 %v409, %v628
    %v726 = vadd.f32 %v410, %v720
    %v727 = vadd.f32 %v411, %v631
    %v728 = vadd.f32 %v412, %v723
    %729 = vst [vmem:[#allocation3] sm:$0xff] %v725
    %730 = vst [vmem:[#allocation3 + $0x8] sm:$0xff] %v726
    %731 = vst [vmem:[#allocation3 + $0x10] sm:$0xff] %v727
    %732 = vst [vmem:[#allocation3 + $0x18] sm:$0xff] %v728
    // Predicated region
    $region34: #{tpu_custom_call.1} parent=1 // pred_check
      %p733 = pneg %p65
    $region35: #{tpu_custom_call.1} parent=1 // pred_check_branch
      %735 = sbr.rel (%p733) target = $region37
    $region36: #{tpu_custom_call.1} parent=1 // pred_region
      %v736 = vld [vmem:[#allocation2] sm:$0xff]
      %v737 = vld [vmem:[#allocation2 + $0x8] sm:$0xff]
      %v738 = vld [vmem:[#allocation2 + $0x10] sm:$0xff]
      %v739 = vld [vmem:[#allocation2 + $0x18] sm:$0xff]
      %v740 = vld [vmem:[#allocation3] sm:$0xff]
      %v741 = vld [vmem:[#allocation3 + $0x8] sm:$0xff]
      %v742 = vld [vmem:[#allocation3 + $0x10] sm:$0xff]
      %v743 = vld [vmem:[#allocation3 + $0x18] sm:$0xff]
      %v744 = vmul.f32 %v736, %v740
      %v745 = vmul.f32 %v737, %v741
      %v746 = vmul.f32 %v738, %v742
      %v747 = vmul.f32 %v739, %v743
      %v748 = vld [vmem:[%s3] sm:$0x3]
      %vm749 = vcmp.gt.f32.partialorder %v748, 0.0
      %v750 = vsub.f32 1.0, %v744
      %v751 = vsub.f32 1.0, %v745
      %v752 = vsub.f32 1.0, %v746
      %v753 = vsub.f32 1.0, %v747
      %v754 = vsel %vm749, 1, 0
      %v755 = vperm.slane %v754, 0
      %v756 = vperm.slane %v754, 1
      %vm757 = vcmp.eq.s32.totalorder %v755, 1
      %vm758 = vcmp.eq.s32.totalorder %v756, 1
      %v759 = vsel %vm757, %v750, %v744
      %v760 = vsel %vm758, %v751, %v745
      %v761 = vsel %vm757, %v752, %v746
      %v762 = vsel %vm758, %v753, %v747
      %763 = vst [vmem:[#allocation10] sm:$0xff] %v759
      %764 = vst [vmem:[#allocation10 + $0x8] sm:$0xff] %v760
      %765 = vst [vmem:[#allocation10 + $0x10] sm:$0xff] %v761
      %766 = vst [vmem:[#allocation10 + $0x18] sm:$0xff] %v762
    $region37: #{tpu_custom_call.1} parent=1 // pred_fallthru
      _
    // Predicated region
    $region38: #{tpu_custom_call.1} parent=1 // pred_check
      _
    $region39: #{tpu_custom_call.1} parent=1 // pred_check_branch
      %768 = sbr.rel (0) target = $region41
    $region40: #{tpu_custom_call.1} parent=1 // pred_region
      %770 = vsyncadd [#allocation6], 0
      %s771 = sshll.u32 [#allocation10], 4
      %s772 = int_to_ptr.vmem [resolvable:$true] %s771
      %s773 = sshll.u32 %s4, 4
      %s774 = int_to_ptr.hbm [resolvable:$true] %s773
      %779 = dma.vmem_to_hbm [thread:$0]  %s772, 512, %s774, [#allocation6], 256, 256, 16
    $region41: #{tpu_custom_call.1} parent=1 // pred_fallthru
      _
    // Predicated region
    $region42: #{tpu_custom_call.1} parent=1 // pred_check
      _
    $region43: #{tpu_custom_call.1} parent=1 // pred_check_branch
      %781 = sbr.rel (0) target = $region45
    $region44: #{tpu_custom_call.1} parent=1 // pred_region
      %783 = dma.done [#allocation6], 512
    $region45: #{tpu_custom_call.1} parent=1 // pred_fallthru
      _
    %784 = vsyncpa [#allocation5], 1
    %785 = vsyncpa [#allocation8], 1
    %786 = vsyncpa [#allocation6], 1

</llo_original>
